<compile_context>
chip_gen: v7x
topology: tpu7x:2x2x1
jax: 0.10.0
libtpu: 0.0.40
codegen_flags: <defaults>
</compile_context>

<pallas_src>
import numpy as np
import jax
import jax.numpy as jnp
from jax.experimental import pallas as pl
from jax.experimental.pallas import tpu as pltpu


# ----------------------------------------------------------------------------
# Fused kernel: RNN recurrence + Linear + Softmax, everything VMEM-resident.
# ----------------------------------------------------------------------------
def fused_rnn_head_kernel(x_ref, h0_ref, wih_ref, whh_ref, brnn_ref,
                          wlin_ref, blin_ref, policy_ref, hfin_ref):
    B, T, D = x_ref.shape
    H = h0_ref.shape[-1]

    # --- Hoisted, time-parallel input projection: one (B*T, D) @ (D, H). ---
    x2d = x_ref[...].reshape(B * T, D)                       # row = b*T + t
    xw = (jnp.dot(x2d, wih_ref[...], preferred_element_type=jnp.float32)
          + brnn_ref[...]).reshape(B, T, H)

    # --- Serial recurrence, fully unrolled (T is small and static). ---------
    whh = whh_ref[...]
    h = h0_ref[...]                                          # (B, H)
    ys = []
    for t in range(T):
        h = jnp.tanh(xw[:, t, :]
                     + jnp.dot(h, whh, preferred_element_type=jnp.float32))
        ys.append(h)
    hfin_ref[...] = h.astype(hfin_ref.dtype)

    # --- Batch-major Y, matching torch's Y.reshape(-1, H) row order. --------
    y2d = jnp.stack(ys, axis=1).reshape(B * T, H)            # (B*T, H)

    # --- Fused Linear + Softmax(dim=1) head. --------------------------------
    logits = (jnp.dot(y2d, wlin_ref[...], preferred_element_type=jnp.float32)
              + blin_ref[...])
    m = jnp.max(logits, axis=-1, keepdims=True)
    e = jnp.exp(logits - m)
    inv = pl.reciprocal(jnp.sum(e, axis=-1, keepdims=True))  # exact (approx=False)
    policy_ref[...] = (e * inv).astype(policy_ref.dtype)


def fused_rnn_head(x, h0, wih_t, whh_t, b_rnn, wlin_t, b_lin):
    B, T, _ = x.shape
    H = h0.shape[-1]
    dout = wlin_t.shape[-1]
    vmem = lambda: pl.BlockSpec(memory_space=pltpu.MemorySpace.VMEM)
    policy, h_final = pl.pallas_call(
        fused_rnn_head_kernel,
        out_shape=(jax.ShapeDtypeStruct((B * T, dout), jnp.float32),
                   jax.ShapeDtypeStruct((B, H), jnp.float32)),
        in_specs=[vmem() for _ in range(7)],
        out_specs=(vmem(), vmem()),
    )(x, h0, wih_t, whh_t, b_rnn, wlin_t, b_lin)
    return policy, h_final


# ----------------------------------------------------------------------------
# Model wrapper (parameter plumbing only — no extra kernels / transposes of Y).
# ----------------------------------------------------------------------------
@jax.jit
def rnn_model_forward(inputs, state, params):
    """inputs: (B, T, din) f32, state: (1, B, H) f32 -> dict like RNNModel.forward."""
    wih_t = params["W_ih"].T                      # (din, H)
    whh_t = params["W_hh"].T                      # (H, H)
    b_rnn = (params["b_ih"] + params["b_hh"]).reshape(1, -1)
    wlin_t = params["W_lin"].T                    # (H, dout)
    blin = params["b_lin"].reshape(1, -1)

    h0 = state[0]                                 # (B, H)
    policy, h_final = fused_rnn_head(inputs, h0, wih_t, whh_t,
                                     b_rnn, wlin_t, blin)
    return {"policy": policy, "value": None, "state": h_final[None],
            "activations": None, "pred_supervised": None, "output_sham": None}


def init_params(key, din, dout, num_hiddens, initbias=5.0):
    """PyTorch-style init: uniform(-1/sqrt(H), 1/sqrt(H)); linear.bias[0]=initbias."""
    ks = jax.random.split(key, 6)
    k = 1.0 / np.sqrt(num_hiddens)
    u = lambda kk, shp: jax.random.uniform(kk, shp, jnp.float32, -k, k)
    b_lin = u(ks[5], (dout,)).at[0].set(initbias)
    return {
        "W_ih": u(ks[0], (num_hiddens, din)),
        "W_hh": u(ks[1], (num_hiddens, num_hiddens)),
        "b_ih": u(ks[2], (num_hiddens,)),
        "b_hh": u(ks[3], (num_hiddens,)),
        "W_lin": u(ks[4], (dout, num_hiddens)),
        "b_lin": b_lin,
    }


def reference_forward(inputs, state, params):
    """Pure-JAX reference of the PyTorch forward for validation."""
    wih, whh = params["W_ih"], params["W_hh"]
    b = params["b_ih"] + params["b_hh"]

    def step(h, x_t):
        h_new = jnp.tanh(x_t @ wih.T + h @ whh.T + b)
        return h_new, h_new

    h0 = state[0]
    hN, ys = jax.lax.scan(step, h0, jnp.transpose(inputs, (1, 0, 2)))
    y_bth = jnp.transpose(ys, (1, 0, 2))
    y2d = y_bth.reshape(-1, y_bth.shape[-1])
    logits = y2d @ params["W_lin"].T + params["b_lin"]
    policy = jax.nn.softmax(logits, axis=1)
    return policy, hN[None]


if __name__ == "__main__":
    B, T = 2, 8          # batch, seq
    DIN, H, DOUT = 4, 32, 3

    key = jax.random.PRNGKey(0)
    k_par, k_in, k_st = jax.random.split(key, 3)

    params = init_params(k_par, DIN, DOUT, H)
    inputs = jax.random.normal(k_in, (B, T, DIN), jnp.float32)
    # begin_state: sigma * uniform(0, 1), shape (num_layers*dirs, B, H)
    state = 1.0 * jax.random.uniform(k_st, (1, B, H), jnp.float32)

    out = rnn_model_forward(inputs, state, params)
    policy = jax.block_until_ready(out["policy"])
    new_state = jax.block_until_ready(out["state"])

    # Full-precision reference matmuls so the tight tolerance is meaningful.
    with jax.default_matmul_precision("highest"):
        ref_policy, ref_state = reference_forward(inputs, state, params)

    assert policy.shape == (B * T, DOUT)
    assert new_state.shape == (1, B, H)
    np.testing.assert_allclose(np.asarray(policy), np.asarray(ref_policy),
                               rtol=1e-5, atol=1e-5)
    np.testing.assert_allclose(np.asarray(new_state), np.asarray(ref_state),
                               rtol=1e-5, atol=1e-5)

    print("KERNEL_OK")
</pallas_src>

<mosaic_0001>
module attributes {stable_mosaic.version = 11 : i64} {
  func.func @fused_rnn_head_kernel(%arg0: memref<2x8x4xf32, #tpu.memory_space<vmem>>, %arg1: memref<2x32xf32, #tpu.memory_space<vmem>>, %arg2: memref<4x32xf32, #tpu.memory_space<vmem>>, %arg3: memref<32x32xf32, #tpu.memory_space<vmem>>, %arg4: memref<1x32xf32, #tpu.memory_space<vmem>>, %arg5: memref<32x3xf32, #tpu.memory_space<vmem>>, %arg6: memref<1x3xf32, #tpu.memory_space<vmem>>, %arg7: memref<16x3xf32, #tpu.memory_space<vmem>>, %arg8: memref<2x32xf32, #tpu.memory_space<vmem>>) attributes {dimension_semantics = [], scalar_prefetch = 0 : i64, scratch_operands = 0 : i64, tpu.core_type = #tpu.core_type<tc>} {
    %c0 = arith.constant 0 : index
    %c0_0 = arith.constant 0 : index
    %c0_1 = arith.constant 0 : index
    %0 = vector.load %arg0[%c0, %c0_0, %c0_1] : memref<2x8x4xf32, #tpu.memory_space<vmem>>, vector<2x8x4xf32>
    %1 = vector.shape_cast %0 : vector<2x8x4xf32> to vector<16x4xf32>
    %c0_2 = arith.constant 0 : index
    %c0_3 = arith.constant 0 : index
    %2 = vector.load %arg2[%c0_2, %c0_3] : memref<4x32xf32, #tpu.memory_space<vmem>>, vector<4x32xf32>
    %cst = arith.constant dense<0.000000e+00> : vector<16x32xf32>
    %3 = tpu.matmul %1, %2, %cst {dimension_numbers = #tpu.dot_dimension_numbers<[1], [0], [0], [1], [0, 0, 1, 1], [], []>} : vector<16x4xf32>, vector<4x32xf32>, vector<16x32xf32> -> vector<16x32xf32>
    %c0_4 = arith.constant 0 : index
    %c0_5 = arith.constant 0 : index
    %4 = vector.load %arg4[%c0_4, %c0_5] : memref<1x32xf32, #tpu.memory_space<vmem>>, vector<1x32xf32>
    %5 = vector.broadcast %4 : vector<1x32xf32> to vector<16x32xf32>
    %6 = arith.addf %3, %5 : vector<16x32xf32>
    %7 = vector.shape_cast %6 : vector<16x32xf32> to vector<2x8x32xf32>
    %c0_6 = arith.constant 0 : index
    %c0_7 = arith.constant 0 : index
    %8 = vector.load %arg3[%c0_6, %c0_7] : memref<32x32xf32, #tpu.memory_space<vmem>>, vector<32x32xf32>
    %c0_8 = arith.constant 0 : index
    %c0_9 = arith.constant 0 : index
    %9 = vector.load %arg1[%c0_8, %c0_9] : memref<2x32xf32, #tpu.memory_space<vmem>>, vector<2x32xf32>
    %10 = vector.extract_strided_slice %7 {offsets = [0, 0, 0], sizes = [2, 1, 32], strides = [1, 1, 1]} : vector<2x8x32xf32> to vector<2x1x32xf32>
    %11 = vector.shape_cast %10 : vector<2x1x32xf32> to vector<2x32xf32>
    %cst_10 = arith.constant dense<0.000000e+00> : vector<2x32xf32>
    %12 = tpu.matmul %9, %8, %cst_10 {dimension_numbers = #tpu.dot_dimension_numbers<[1], [0], [0], [1], [0, 0, 1, 1], [], []>} : vector<2x32xf32>, vector<32x32xf32>, vector<2x32xf32> -> vector<2x32xf32>
    %13 = arith.addf %11, %12 : vector<2x32xf32>
    %14 = math.tanh %13 : vector<2x32xf32>
    %15 = vector.extract_strided_slice %7 {offsets = [0, 1, 0], sizes = [2, 1, 32], strides = [1, 1, 1]} : vector<2x8x32xf32> to vector<2x1x32xf32>
    %16 = vector.shape_cast %15 : vector<2x1x32xf32> to vector<2x32xf32>
    %cst_11 = arith.constant dense<0.000000e+00> : vector<2x32xf32>
    %17 = tpu.matmul %14, %8, %cst_11 {dimension_numbers = #tpu.dot_dimension_numbers<[1], [0], [0], [1], [0, 0, 1, 1], [], []>} : vector<2x32xf32>, vector<32x32xf32>, vector<2x32xf32> -> vector<2x32xf32>
    %18 = arith.addf %16, %17 : vector<2x32xf32>
    %19 = math.tanh %18 : vector<2x32xf32>
    %20 = vector.extract_strided_slice %7 {offsets = [0, 2, 0], sizes = [2, 1, 32], strides = [1, 1, 1]} : vector<2x8x32xf32> to vector<2x1x32xf32>
    %21 = vector.shape_cast %20 : vector<2x1x32xf32> to vector<2x32xf32>
    %cst_12 = arith.constant dense<0.000000e+00> : vector<2x32xf32>
    %22 = tpu.matmul %19, %8, %cst_12 {dimension_numbers = #tpu.dot_dimension_numbers<[1], [0], [0], [1], [0, 0, 1, 1], [], []>} : vector<2x32xf32>, vector<32x32xf32>, vector<2x32xf32> -> vector<2x32xf32>
    %23 = arith.addf %21, %22 : vector<2x32xf32>
    %24 = math.tanh %23 : vector<2x32xf32>
    %25 = vector.extract_strided_slice %7 {offsets = [0, 3, 0], sizes = [2, 1, 32], strides = [1, 1, 1]} : vector<2x8x32xf32> to vector<2x1x32xf32>
    %26 = vector.shape_cast %25 : vector<2x1x32xf32> to vector<2x32xf32>
    %cst_13 = arith.constant dense<0.000000e+00> : vector<2x32xf32>
    %27 = tpu.matmul %24, %8, %cst_13 {dimension_numbers = #tpu.dot_dimension_numbers<[1], [0], [0], [1], [0, 0, 1, 1], [], []>} : vector<2x32xf32>, vector<32x32xf32>, vector<2x32xf32> -> vector<2x32xf32>
    %28 = arith.addf %26, %27 : vector<2x32xf32>
    %29 = math.tanh %28 : vector<2x32xf32>
    %30 = vector.extract_strided_slice %7 {offsets = [0, 4, 0], sizes = [2, 1, 32], strides = [1, 1, 1]} : vector<2x8x32xf32> to vector<2x1x32xf32>
    %31 = vector.shape_cast %30 : vector<2x1x32xf32> to vector<2x32xf32>
    %cst_14 = arith.constant dense<0.000000e+00> : vector<2x32xf32>
    %32 = tpu.matmul %29, %8, %cst_14 {dimension_numbers = #tpu.dot_dimension_numbers<[1], [0], [0], [1], [0, 0, 1, 1], [], []>} : vector<2x32xf32>, vector<32x32xf32>, vector<2x32xf32> -> vector<2x32xf32>
    %33 = arith.addf %31, %32 : vector<2x32xf32>
    %34 = math.tanh %33 : vector<2x32xf32>
    %35 = vector.extract_strided_slice %7 {offsets = [0, 5, 0], sizes = [2, 1, 32], strides = [1, 1, 1]} : vector<2x8x32xf32> to vector<2x1x32xf32>
    %36 = vector.shape_cast %35 : vector<2x1x32xf32> to vector<2x32xf32>
    %cst_15 = arith.constant dense<0.000000e+00> : vector<2x32xf32>
    %37 = tpu.matmul %34, %8, %cst_15 {dimension_numbers = #tpu.dot_dimension_numbers<[1], [0], [0], [1], [0, 0, 1, 1], [], []>} : vector<2x32xf32>, vector<32x32xf32>, vector<2x32xf32> -> vector<2x32xf32>
    %38 = arith.addf %36, %37 : vector<2x32xf32>
    %39 = math.tanh %38 : vector<2x32xf32>
    %40 = vector.extract_strided_slice %7 {offsets = [0, 6, 0], sizes = [2, 1, 32], strides = [1, 1, 1]} : vector<2x8x32xf32> to vector<2x1x32xf32>
    %41 = vector.shape_cast %40 : vector<2x1x32xf32> to vector<2x32xf32>
    %cst_16 = arith.constant dense<0.000000e+00> : vector<2x32xf32>
    %42 = tpu.matmul %39, %8, %cst_16 {dimension_numbers = #tpu.dot_dimension_numbers<[1], [0], [0], [1], [0, 0, 1, 1], [], []>} : vector<2x32xf32>, vector<32x32xf32>, vector<2x32xf32> -> vector<2x32xf32>
    %43 = arith.addf %41, %42 : vector<2x32xf32>
    %44 = math.tanh %43 : vector<2x32xf32>
    %45 = vector.extract_strided_slice %7 {offsets = [0, 7, 0], sizes = [2, 1, 32], strides = [1, 1, 1]} : vector<2x8x32xf32> to vector<2x1x32xf32>
    %46 = vector.shape_cast %45 : vector<2x1x32xf32> to vector<2x32xf32>
    %cst_17 = arith.constant dense<0.000000e+00> : vector<2x32xf32>
    %47 = tpu.matmul %44, %8, %cst_17 {dimension_numbers = #tpu.dot_dimension_numbers<[1], [0], [0], [1], [0, 0, 1, 1], [], []>} : vector<2x32xf32>, vector<32x32xf32>, vector<2x32xf32> -> vector<2x32xf32>
    %48 = arith.addf %46, %47 : vector<2x32xf32>
    %49 = math.tanh %48 : vector<2x32xf32>
    %c0_18 = arith.constant 0 : index
    %c0_19 = arith.constant 0 : index
    %50 = vector.load %arg8[%c0_18, %c0_19] : memref<2x32xf32, #tpu.memory_space<vmem>>, vector<2x32xf32>
    tpu.vector_store %arg8[%c0_18, %c0_19], %49 {strides = array<i32>} : memref<2x32xf32, #tpu.memory_space<vmem>>, vector<2x32xf32>,
    %51 = vector.shape_cast %14 : vector<2x32xf32> to vector<2x1x32xf32>
    %52 = vector.shape_cast %19 : vector<2x32xf32> to vector<2x1x32xf32>
    %53 = vector.shape_cast %24 : vector<2x32xf32> to vector<2x1x32xf32>
    %54 = vector.shape_cast %29 : vector<2x32xf32> to vector<2x1x32xf32>
    %55 = vector.shape_cast %34 : vector<2x32xf32> to vector<2x1x32xf32>
    %56 = vector.shape_cast %39 : vector<2x32xf32> to vector<2x1x32xf32>
    %57 = vector.shape_cast %44 : vector<2x32xf32> to vector<2x1x32xf32>
    %58 = vector.shape_cast %49 : vector<2x32xf32> to vector<2x1x32xf32>
    %59 = tpu.concatenate %51, %52, %53, %54, %55, %56, %57, %58 in 1 : vector<2x1x32xf32>, vector<2x1x32xf32>, vector<2x1x32xf32>, vector<2x1x32xf32>, vector<2x1x32xf32>, vector<2x1x32xf32>, vector<2x1x32xf32>, vector<2x1x32xf32> -> vector<2x8x32xf32>
    %60 = vector.shape_cast %59 : vector<2x8x32xf32> to vector<16x32xf32>
    %c0_20 = arith.constant 0 : index
    %c0_21 = arith.constant 0 : index
    %61 = vector.load %arg5[%c0_20, %c0_21] : memref<32x3xf32, #tpu.memory_space<vmem>>, vector<32x3xf32>
    %cst_22 = arith.constant dense<0.000000e+00> : vector<16x3xf32>
    %62 = tpu.matmul %60, %61, %cst_22 {dimension_numbers = #tpu.dot_dimension_numbers<[1], [0], [0], [1], [0, 0, 1, 1], [], []>} : vector<16x32xf32>, vector<32x3xf32>, vector<16x3xf32> -> vector<16x3xf32>
    %c0_23 = arith.constant 0 : index
    %c0_24 = arith.constant 0 : index
    %63 = vector.load %arg6[%c0_23, %c0_24] : memref<1x3xf32, #tpu.memory_space<vmem>>, vector<1x3xf32>
    %64 = vector.broadcast %63 : vector<1x3xf32> to vector<16x3xf32>
    %65 = arith.addf %62, %64 : vector<16x3xf32>
    %cst_25 = arith.constant dense<0xFF800000> : vector<16xf32>
    %66 = vector.multi_reduction <maximumf>, %65, %cst_25 [1] : vector<16x3xf32> to vector<16xf32>
    %67 = vector.shape_cast %66 : vector<16xf32> to vector<16x1xf32>
    %68 = vector.broadcast %67 : vector<16x1xf32> to vector<16x3xf32>
    %69 = arith.subf %65, %68 : vector<16x3xf32>
    %70 = math.exp %69 : vector<16x3xf32>
    %cst_26 = arith.constant dense<0.000000e+00> : vector<16xf32>
    %71 = vector.multi_reduction <add>, %70, %cst_26 [1] : vector<16x3xf32> to vector<16xf32>
    %72 = vector.shape_cast %71 : vector<16xf32> to vector<16x1xf32>
    %73 = tpu.reciprocal %72 : vector<16x1xf32> -> vector<16x1xf32>
    %74 = vector.broadcast %73 : vector<16x1xf32> to vector<16x3xf32>
    %75 = arith.mulf %70, %74 : vector<16x3xf32>
    %c0_27 = arith.constant 0 : index
    %c0_28 = arith.constant 0 : index
    %76 = vector.load %arg7[%c0_27, %c0_28] : memref<16x3xf32, #tpu.memory_space<vmem>>, vector<16x3xf32>
    tpu.vector_store %arg7[%c0_27, %c0_28], %75 {strides = array<i32>} : memref<16x3xf32, #tpu.memory_space<vmem>>, vector<16x3xf32>,
    return
  }
}

</mosaic_0001>

<llo_original>
// kernel: rnn_model_forward.1
$region0: #{rnn_model_forward.1}
  #allocation0 [shape = 'u32[]', space=smem, size = 0x4, offset = 0x4, fixed_abs, tag = 'smem constant byte address 0x4 - core index']
  #allocation1 [shape = 'u32[144,128]{1,0:T(1,128)}', space=vmem, size = 0x12000, scoped, tag = 'internal scratch']
  %s0 = inlined_call_operand.vmem [shape: f32[2,8,4], index: 0, kind: input, shape index: {}]
  %s1 = inlined_call_operand.vmem [shape: f32[2,32], index: 1, kind: input, shape index: {}]
  %s2 = inlined_call_operand.vmem [shape: f32[4,32], index: 2, kind: input, shape index: {}]
  %s3 = inlined_call_operand.vmem [shape: f32[32,32], index: 3, kind: input, shape index: {}]
  %s4 = inlined_call_operand.vmem [shape: f32[1,32], index: 4, kind: input, shape index: {}]
  %s5 = inlined_call_operand.vmem [shape: f32[32,3], index: 5, kind: input, shape index: {}]
  %s6 = inlined_call_operand.vmem [shape: f32[1,3], index: 6, kind: input, shape index: {}]
  %s7 = inlined_call_operand.vmem [shape: f32[16,3], index: 7, kind: output, shape index: {0}]
  %s8 = inlined_call_operand.hbm [shape: f32[2,32], index: 8, kind: output, shape index: {1}]
  %9 = xla_tuple %s7, %s8
  %s10 = sld [smem:[#allocation0]]
  $region46: #{rnn_model_forward.1} parent=0
    _
  %s12 = ssub.s32 1, %s10
  %s13 = scalar_select 0, %s12, %s10
  $region1: #{rnn_model_forward.1} parent=0
    #allocation2 [shape = 'u8[1024]{0}', space=vmem, size = 0x400, scoped, tag = 'output window, operand 1, single buffered']
    #allocation3 [shape = 's32[1]{0}', space=sflag, size = 0x4, scoped, tag = 'scoped memory for rnn_model_forward.1']
    %14 = vsyncpa [#allocation3], 0
    // Predicated region
    $region2: #{rnn_model_forward.1} parent=1 // pred_check
      _
    $region3: #{rnn_model_forward.1} parent=1 // pred_check_branch
      %16 = sbr.rel (0) target = $region5
    $region4: #{rnn_model_forward.1} parent=1 // pred_region
      _
    $region5: #{rnn_model_forward.1} parent=1 // pred_fallthru
      _
    // Predicated region
    $region6: #{rnn_model_forward.1} parent=1 // pred_check
      _
    $region7: #{rnn_model_forward.1} parent=1 // pred_check_branch
      %18 = sbr.rel (0) target = $region9
    $region8: #{rnn_model_forward.1} parent=1 // pred_region
      _
    $region9: #{rnn_model_forward.1} parent=1 // pred_fallthru
      _
    // Predicated region
    $region10: #{rnn_model_forward.1} parent=1 // pred_check
      _
    $region11: #{rnn_model_forward.1} parent=1 // pred_check_branch
      %20 = sbr.rel (0) target = $region13
    $region12: #{rnn_model_forward.1} parent=1 // pred_region
      _
    $region13: #{rnn_model_forward.1} parent=1 // pred_fallthru
      _
    // Predicated region
    $region14: #{rnn_model_forward.1} parent=1 // pred_check
      _
    $region15: #{rnn_model_forward.1} parent=1 // pred_check_branch
      %22 = sbr.rel (0) target = $region17
    $region16: #{rnn_model_forward.1} parent=1 // pred_region
      _
    $region17: #{rnn_model_forward.1} parent=1 // pred_fallthru
      _
    // Predicated region
    $region18: #{rnn_model_forward.1} parent=1 // pred_check
      _
    $region19: #{rnn_model_forward.1} parent=1 // pred_check_branch
      %24 = sbr.rel (0) target = $region21
    $region20: #{rnn_model_forward.1} parent=1 // pred_region
      _
    $region21: #{rnn_model_forward.1} parent=1 // pred_fallthru
      _
    // Predicated region
    $region22: #{rnn_model_forward.1} parent=1 // pred_check
      _
    $region23: #{rnn_model_forward.1} parent=1 // pred_check_branch
      %26 = sbr.rel (0) target = $region25
    $region24: #{rnn_model_forward.1} parent=1 // pred_region
      _
    $region25: #{rnn_model_forward.1} parent=1 // pred_fallthru
      _
    // Predicated region
    $region26: #{rnn_model_forward.1} parent=1 // pred_check
      _
    $region27: #{rnn_model_forward.1} parent=1 // pred_check_branch
      %28 = sbr.rel (0) target = $region29
    $region28: #{rnn_model_forward.1} parent=1 // pred_region
      _
    $region29: #{rnn_model_forward.1} parent=1 // pred_fallthru
      _
    %v29 = vld [vmem:[%s0] sm:$0xff]
    %v30 = vld [vmem:[%s0 + $0x8] sm:$0xff]
    %v31 = vld [vmem:[%s2] sm:$0xf]
    %v32 = vld [vmem:[%s4] sm:$0x1]
    %v34 = vlaneseq
    %v35 = vshrl.u32 %v34, 7
    %v36 = vsub.s32 0, %v35
    %v37 = vrot.slane %v32, %v36
    %vm39 = vcmask 31744
    %v41 = vsel %vm39, %v29, 0
    %v44 = vsel %vm39, %v30, 0
    %vm46 = vcmask 1043456
    %v48 = vsel %vm46, %v31, 0
    %50 = vmatprep.subr.mxu0 0.0
    %51 = vmatpush1.msra.mxu0 %v48
    %52 = vmatprep.subr.mxu0 0.0
    %53 = vmatpush1.msra.mxu0 0.0
    %54 = vmatprep.subr.mxu0 0.0
    %55 = vmatpush1.msra.mxu0 0.0
    %56 = vmatprep.subr.mxu0 0.0
    %57 = vmatpush1.msra.mxu0 0.0
    %58 = vmatprep.subr.mxu0 0.0
    %59 = vmatpush1.msra.mxu0 0.0
    %60 = vmatprep.subr.mxu0 0.0
    %61 = vmatpush1.msra.mxu0 0.0
    %62 = vmatprep.subr.mxu0 0.0
    %63 = vmatpush1.msra.mxu0 0.0
    %64 = vmatprep.subr.mxu0 0.0
    %65 = vmatpush1.msra.mxu0 0.0
    %66 = vmatprep.subr.mxu0 0.0
    %67 = vmatpush1.msra.mxu0 0.0
    %68 = vmatprep.subr.mxu0 0.0
    %69 = vmatpush1.msra.mxu0 0.0
    %70 = vmatprep.subr.mxu0 0.0
    %71 = vmatpush1.msra.mxu0 0.0
    %72 = vmatprep.subr.mxu0 0.0
    %73 = vmatpush1.msra.mxu0 0.0
    %74 = vmatprep.subr.mxu0 0.0
    %75 = vmatpush1.msra.mxu0 0.0
    %76 = vmatprep.subr.mxu0 0.0
    %77 = vmatpush1.msra.mxu0 0.0
    %78 = vmatprep.subr.mxu0 0.0
    %79 = vmatpush1.msra.mxu0 0.0
    %80 = vmatprep.subr.mxu0 0.0
    %81 = vmatpush1.msra.mxu0 0.0
    %82 = vmatprep.subr.mxu0 0.0
    %83 = vmatpush1.msra.mxu0 0.0
    %84 = vmatprep.subr.mxu0 0.0
    %85 = vmatpush1.msra.mxu0 0.0
    %86 = vmatprep.subr.mxu0 0.0
    %87 = vmatpush1.msra.mxu0 0.0
    %88 = vmatprep.subr.mxu0 0.0
    %89 = vmatpush1.msra.mxu0 0.0
    %90 = vmatprep.subr.mxu0 0.0
    %91 = vmatpush1.msra.mxu0 0.0
    %92 = vmatprep.subr.mxu0 0.0
    %93 = vmatpush1.msra.mxu0 0.0
    %94 = vmatprep.subr.mxu0 0.0
    %95 = vmatpush1.msra.mxu0 0.0
    %96 = vmatprep.subr.mxu0 0.0
    %97 = vmatpush1.msra.mxu0 0.0
    %98 = vmatprep.subr.mxu0 0.0
    %99 = vmatpush1.msra.mxu0 0.0
    %100 = vmatprep.subr.mxu0 0.0
    %101 = vmatpush1.msra.mxu0 0.0
    %102 = vmatprep.subr.mxu0 0.0
    %103 = vmatpush1.msra.mxu0 0.0
    %104 = vmatprep.subr.mxu0 0.0
    %105 = vmatpush1.msra.mxu0 0.0
    %106 = vmatprep.subr.mxu0 0.0
    %107 = vmatpush1.msra.mxu0 0.0
    %108 = vmatprep.subr.mxu0 0.0
    %109 = vmatpush1.msra.mxu0 0.0
    %110 = vmatprep.subr.mxu0 0.0
    %111 = vmatpush1.msra.mxu0 0.0
    %112 = vmatprep.subr.mxu0 0.0
    %113 = vmatpush1.msra.mxu0 0.0
    %114 = vmatprep.mubr.f32.mxu0 0.0
    %115 = vmatmul.mubr.f32.gmra.mrb[0].mxu0 %v41
    %v116 = vpop.f32.mrb[0].mxu0
    %v117 = vadd.f32 %v37, %v116
    %v118 = vpop.f32.mrb[0].mxu0
    %119 = vmatprep.mubr.f32.mxu0 0.0
    %120 = vmatmul.mubr.f32.gmra.mrb[0].mxu0 %v44
    %v121 = vpop.f32.mrb[0].mxu0
    %v122 = vadd.f32 %v37, %v121
    %v123 = vpop.f32.mrb[0].mxu0
    %124 = vdwg.mxu0
    %v125 = vld [vmem:[%s3] sm:$0xff]
    %v126 = vld [vmem:[%s3 + $0x8] sm:$0xff]
    %v127 = vld [vmem:[%s3 + $0x10] sm:$0xff]
    %v128 = vld [vmem:[%s3 + $0x18] sm:$0xff]
    %v129 = vld [vmem:[%s1] sm:$0x3]
    %vm130 = vcmask 261120
    %v132 = vsel %vm130, %v129, 0
    %134 = vmatprep.subr.mxu0 0.0
    %135 = vmatpush1.msra.mxu0 %v125
    %136 = vmatprep.subr.mxu0 0.0
    %137 = vmatpush1.msra.mxu0 %v126
    %138 = vmatprep.subr.mxu0 0.0
    %139 = vmatpush1.msra.mxu0 %v127
    %140 = vmatprep.subr.mxu0 0.0
    %141 = vmatpush1.msra.mxu0 %v128
    %142 = vmatprep.subr.mxu0 0.0
    %143 = vmatpush1.msra.mxu0 0.0
    %144 = vmatprep.subr.mxu0 0.0
    %145 = vmatpush1.msra.mxu0 0.0
    %146 = vmatprep.subr.mxu0 0.0
    %147 = vmatpush1.msra.mxu0 0.0
    %148 = vmatprep.subr.mxu0 0.0
    %149 = vmatpush1.msra.mxu0 0.0
    %150 = vmatprep.subr.mxu0 0.0
    %151 = vmatpush1.msra.mxu0 0.0
    %152 = vmatprep.subr.mxu0 0.0
    %153 = vmatpush1.msra.mxu0 0.0
    %154 = vmatprep.subr.mxu0 0.0
    %155 = vmatpush1.msra.mxu0 0.0
    %156 = vmatprep.subr.mxu0 0.0
    %157 = vmatpush1.msra.mxu0 0.0
    %158 = vmatprep.subr.mxu0 0.0
    %159 = vmatpush1.msra.mxu0 0.0
    %160 = vmatprep.subr.mxu0 0.0
    %161 = vmatpush1.msra.mxu0 0.0
    %162 = vmatprep.subr.mxu0 0.0
    %163 = vmatpush1.msra.mxu0 0.0
    %164 = vmatprep.subr.mxu0 0.0
    %165 = vmatpush1.msra.mxu0 0.0
    %166 = vmatprep.subr.mxu0 0.0
    %167 = vmatpush1.msra.mxu0 0.0
    %168 = vmatprep.subr.mxu0 0.0
    %169 = vmatpush1.msra.mxu0 0.0
    %170 = vmatprep.subr.mxu0 0.0
    %171 = vmatpush1.msra.mxu0 0.0
    %172 = vmatprep.subr.mxu0 0.0
    %173 = vmatpush1.msra.mxu0 0.0
    %174 = vmatprep.subr.mxu0 0.0
    %175 = vmatpush1.msra.mxu0 0.0
    %176 = vmatprep.subr.mxu0 0.0
    %177 = vmatpush1.msra.mxu0 0.0
    %178 = vmatprep.subr.mxu0 0.0
    %179 = vmatpush1.msra.mxu0 0.0
    %180 = vmatprep.subr.mxu0 0.0
    %181 = vmatpush1.msra.mxu0 0.0
    %182 = vmatprep.subr.mxu0 0.0
    %183 = vmatpush1.msra.mxu0 0.0
    %184 = vmatprep.subr.mxu0 0.0
    %185 = vmatpush1.msra.mxu0 0.0
    %186 = vmatprep.subr.mxu0 0.0
    %187 = vmatpush1.msra.mxu0 0.0
    %188 = vmatprep.subr.mxu0 0.0
    %189 = vmatpush1.msra.mxu0 0.0
    %190 = vmatprep.subr.mxu0 0.0
    %191 = vmatpush1.msra.mxu0 0.0
    %192 = vmatprep.subr.mxu0 0.0
    %193 = vmatpush1.msra.mxu0 0.0
    %194 = vmatprep.subr.mxu0 0.0
    %195 = vmatpush1.msra.mxu0 0.0
    %196 = vmatprep.subr.mxu0 0.0
    %197 = vmatpush1.msra.mxu0 0.0
    %198 = vmatprep.mubr.f32.mxu0 0.0
    %199 = vmatmul.mubr.f32.gmra.mrb[0].mxu0 %v132
    %v200 = vpop.f32.mrb[0].mxu0
    %v201 = vadd.f32 0.0, %v200
    %v202 = vpop.f32.mrb[0].mxu0
    %203 = vdwg.mxu0
    %v205 = vrot.slane %v201, 1
    %v208 = vadd.f32 %v117, %v201
    %v209 = vadd.f32 %v122, %v205
    %v210 = vtanh.pop %v208
    %v211 = vtanh.pop %v209
    %v214 = vrot.slane %v211, 7
    %vm215 = vcmask 1041409
    %v216 = vsel %vm215, %v214, %v210
    %v217 = vsel %vm130, %v216, 0
    %219 = vmatprep.subr.mxu0 0.0
    %220 = vmatpush1.msra.mxu0 %v125
    %221 = vmatprep.subr.mxu0 0.0
    %222 = vmatpush1.msra.mxu0 %v126
    %223 = vmatprep.subr.mxu0 0.0
    %224 = vmatpush1.msra.mxu0 %v127
    %225 = vmatprep.subr.mxu0 0.0
    %226 = vmatpush1.msra.mxu0 %v128
    %227 = vmatprep.subr.mxu0 0.0
    %228 = vmatpush1.msra.mxu0 0.0
    %229 = vmatprep.subr.mxu0 0.0
    %230 = vmatpush1.msra.mxu0 0.0
    %231 = vmatprep.subr.mxu0 0.0
    %232 = vmatpush1.msra.mxu0 0.0
    %233 = vmatprep.subr.mxu0 0.0
    %234 = vmatpush1.msra.mxu0 0.0
    %235 = vmatprep.subr.mxu0 0.0
    %236 = vmatpush1.msra.mxu0 0.0
    %237 = vmatprep.subr.mxu0 0.0
    %238 = vmatpush1.msra.mxu0 0.0
    %239 = vmatprep.subr.mxu0 0.0
    %240 = vmatpush1.msra.mxu0 0.0
    %241 = vmatprep.subr.mxu0 0.0
    %242 = vmatpush1.msra.mxu0 0.0
    %243 = vmatprep.subr.mxu0 0.0
    %244 = vmatpush1.msra.mxu0 0.0
    %245 = vmatprep.subr.mxu0 0.0
    %246 = vmatpush1.msra.mxu0 0.0
    %247 = vmatprep.subr.mxu0 0.0
    %248 = vmatpush1.msra.mxu0 0.0
    %249 = vmatprep.subr.mxu0 0.0
    %250 = vmatpush1.msra.mxu0 0.0
    %251 = vmatprep.subr.mxu0 0.0
    %252 = vmatpush1.msra.mxu0 0.0
    %253 = vmatprep.subr.mxu0 0.0
    %254 = vmatpush1.msra.mxu0 0.0
    %255 = vmatprep.subr.mxu0 0.0
    %256 = vmatpush1.msra.mxu0 0.0
    %257 = vmatprep.subr.mxu0 0.0
    %258 = vmatpush1.msra.mxu0 0.0
    %259 = vmatprep.subr.mxu0 0.0
    %260 = vmatpush1.msra.mxu0 0.0
    %261 = vmatprep.subr.mxu0 0.0
    %262 = vmatpush1.msra.mxu0 0.0
    %263 = vmatprep.subr.mxu0 0.0
    %264 = vmatpush1.msra.mxu0 0.0
    %265 = vmatprep.subr.mxu0 0.0
    %266 = vmatpush1.msra.mxu0 0.0
    %267 = vmatprep.subr.mxu0 0.0
    %268 = vmatpush1.msra.mxu0 0.0
    %269 = vmatprep.subr.mxu0 0.0
    %270 = vmatpush1.msra.mxu0 0.0
    %271 = vmatprep.subr.mxu0 0.0
    %272 = vmatpush1.msra.mxu0 0.0
    %273 = vmatprep.subr.mxu0 0.0
    %274 = vmatpush1.msra.mxu0 0.0
    %275 = vmatprep.subr.mxu0 0.0
    %276 = vmatpush1.msra.mxu0 0.0
    %277 = vmatprep.subr.mxu0 0.0
    %278 = vmatpush1.msra.mxu0 0.0
    %279 = vmatprep.subr.mxu0 0.0
    %280 = vmatpush1.msra.mxu0 0.0
    %281 = vmatprep.subr.mxu0 0.0
    %282 = vmatpush1.msra.mxu0 0.0
    %283 = vmatprep.mubr.f32.mxu0 0.0
    %284 = vmatmul.mubr.f32.gmra.mrb[0].mxu0 %v217
    %v285 = vpop.f32.mrb[0].mxu0
    %v286 = vadd.f32 0.0, %v285
    %v287 = vpop.f32.mrb[0].mxu0
    %288 = vdwg.mxu0
    %v290 = vrot.slane %v286, 7
    %v293 = vadd.f32 %v117, %v290
    %v294 = vadd.f32 %v122, %v286
    %v295 = vtanh.pop %v293
    %v296 = vtanh.pop %v294
    %v299 = vrot.slane %v295, 1
    %v300 = vsel %vm215, %v296, %v299
    %v301 = vsel %vm130, %v300, 0
    %303 = vmatprep.subr.mxu0 0.0
    %304 = vmatpush1.msra.mxu0 %v125
    %305 = vmatprep.subr.mxu0 0.0
    %306 = vmatpush1.msra.mxu0 %v126
    %307 = vmatprep.subr.mxu0 0.0
    %308 = vmatpush1.msra.mxu0 %v127
    %309 = vmatprep.subr.mxu0 0.0
    %310 = vmatpush1.msra.mxu0 %v128
    %311 = vmatprep.subr.mxu0 0.0
    %312 = vmatpush1.msra.mxu0 0.0
    %313 = vmatprep.subr.mxu0 0.0
    %314 = vmatpush1.msra.mxu0 0.0
    %315 = vmatprep.subr.mxu0 0.0
    %316 = vmatpush1.msra.mxu0 0.0
    %317 = vmatprep.subr.mxu0 0.0
    %318 = vmatpush1.msra.mxu0 0.0
    %319 = vmatprep.subr.mxu0 0.0
    %320 = vmatpush1.msra.mxu0 0.0
    %321 = vmatprep.subr.mxu0 0.0
    %322 = vmatpush1.msra.mxu0 0.0
    %323 = vmatprep.subr.mxu0 0.0
    %324 = vmatpush1.msra.mxu0 0.0
    %325 = vmatprep.subr.mxu0 0.0
    %326 = vmatpush1.msra.mxu0 0.0
    %327 = vmatprep.subr.mxu0 0.0
    %328 = vmatpush1.msra.mxu0 0.0
    %329 = vmatprep.subr.mxu0 0.0
    %330 = vmatpush1.msra.mxu0 0.0
    %331 = vmatprep.subr.mxu0 0.0
    %332 = vmatpush1.msra.mxu0 0.0
    %333 = vmatprep.subr.mxu0 0.0
    %334 = vmatpush1.msra.mxu0 0.0
    %335 = vmatprep.subr.mxu0 0.0
    %336 = vmatpush1.msra.mxu0 0.0
    %337 = vmatprep.subr.mxu0 0.0
    %338 = vmatpush1.msra.mxu0 0.0
    %339 = vmatprep.subr.mxu0 0.0
    %340 = vmatpush1.msra.mxu0 0.0
    %341 = vmatprep.subr.mxu0 0.0
    %342 = vmatpush1.msra.mxu0 0.0
    %343 = vmatprep.subr.mxu0 0.0
    %344 = vmatpush1.msra.mxu0 0.0
    %345 = vmatprep.subr.mxu0 0.0
    %346 = vmatpush1.msra.mxu0 0.0
    %347 = vmatprep.subr.mxu0 0.0
    %348 = vmatpush1.msra.mxu0 0.0
    %349 = vmatprep.subr.mxu0 0.0
    %350 = vmatpush1.msra.mxu0 0.0
    %351 = vmatprep.subr.mxu0 0.0
    %352 = vmatpush1.msra.mxu0 0.0
    %353 = vmatprep.subr.mxu0 0.0
    %354 = vmatpush1.msra.mxu0 0.0
    %355 = vmatprep.subr.mxu0 0.0
    %356 = vmatpush1.msra.mxu0 0.0
    %357 = vmatprep.subr.mxu0 0.0
    %358 = vmatpush1.msra.mxu0 0.0
    %359 = vmatprep.subr.mxu0 0.0
    %360 = vmatpush1.msra.mxu0 0.0
    %361 = vmatprep.subr.mxu0 0.0
    %362 = vmatpush1.msra.mxu0 0.0
    %363 = vmatprep.subr.mxu0 0.0
    %364 = vmatpush1.msra.mxu0 0.0
    %365 = vmatprep.subr.mxu0 0.0
    %366 = vmatpush1.msra.mxu0 0.0
    %367 = vmatprep.mubr.f32.mxu0 0.0
    %368 = vmatmul.mubr.f32.gmra.mrb[0].mxu0 %v301
    %v369 = vpop.f32.mrb[0].mxu0
    %v370 = vadd.f32 0.0, %v369
    %v371 = vpop.f32.mrb[0].mxu0
    %372 = vdwg.mxu0
    %v374 = vrot.slane %v370, 6
    %v375 = vrot.slane %v370, 7
    %v378 = vadd.f32 %v117, %v374
    %v379 = vadd.f32 %v122, %v375
    %v380 = vtanh.pop %v378
    %v381 = vtanh.pop %v379
    %v384 = vrot.slane %v380, 2
    %v385 = vrot.slane %v381, 1
    %v386 = vsel %vm215, %v385, %v384
    %v387 = vsel %vm130, %v386, 0
    %389 = vmatprep.subr.mxu0 0.0
    %390 = vmatpush1.msra.mxu0 %v125
    %391 = vmatprep.subr.mxu0 0.0
    %392 = vmatpush1.msra.mxu0 %v126
    %393 = vmatprep.subr.mxu0 0.0
    %394 = vmatpush1.msra.mxu0 %v127
    %395 = vmatprep.subr.mxu0 0.0
    %396 = vmatpush1.msra.mxu0 %v128
    %397 = vmatprep.subr.mxu0 0.0
    %398 = vmatpush1.msra.mxu0 0.0
    %399 = vmatprep.subr.mxu0 0.0
    %400 = vmatpush1.msra.mxu0 0.0
    %401 = vmatprep.subr.mxu0 0.0
    %402 = vmatpush1.msra.mxu0 0.0
    %403 = vmatprep.subr.mxu0 0.0
    %404 = vmatpush1.msra.mxu0 0.0
    %405 = vmatprep.subr.mxu0 0.0
    %406 = vmatpush1.msra.mxu0 0.0
    %407 = vmatprep.subr.mxu0 0.0
    %408 = vmatpush1.msra.mxu0 0.0
    %409 = vmatprep.subr.mxu0 0.0
    %410 = vmatpush1.msra.mxu0 0.0
    %411 = vmatprep.subr.mxu0 0.0
    %412 = vmatpush1.msra.mxu0 0.0
    %413 = vmatprep.subr.mxu0 0.0
    %414 = vmatpush1.msra.mxu0 0.0
    %415 = vmatprep.subr.mxu0 0.0
    %416 = vmatpush1.msra.mxu0 0.0
    %417 = vmatprep.subr.mxu0 0.0
    %418 = vmatpush1.msra.mxu0 0.0
    %419 = vmatprep.subr.mxu0 0.0
    %420 = vmatpush1.msra.mxu0 0.0
    %421 = vmatprep.subr.mxu0 0.0
    %422 = vmatpush1.msra.mxu0 0.0
    %423 = vmatprep.subr.mxu0 0.0
    %424 = vmatpush1.msra.mxu0 0.0
    %425 = vmatprep.subr.mxu0 0.0
    %426 = vmatpush1.msra.mxu0 0.0
    %427 = vmatprep.subr.mxu0 0.0
    %428 = vmatpush1.msra.mxu0 0.0
    %429 = vmatprep.subr.mxu0 0.0
    %430 = vmatpush1.msra.mxu0 0.0
    %431 = vmatprep.subr.mxu0 0.0
    %432 = vmatpush1.msra.mxu0 0.0
    %433 = vmatprep.subr.mxu0 0.0
    %434 = vmatpush1.msra.mxu0 0.0
    %435 = vmatprep.subr.mxu0 0.0
    %436 = vmatpush1.msra.mxu0 0.0
    %437 = vmatprep.subr.mxu0 0.0
    %438 = vmatpush1.msra.mxu0 0.0
    %439 = vmatprep.subr.mxu0 0.0
    %440 = vmatpush1.msra.mxu0 0.0
    %441 = vmatprep.subr.mxu0 0.0
    %442 = vmatpush1.msra.mxu0 0.0
    %443 = vmatprep.subr.mxu0 0.0
    %444 = vmatpush1.msra.mxu0 0.0
    %445 = vmatprep.subr.mxu0 0.0
    %446 = vmatpush1.msra.mxu0 0.0
    %447 = vmatprep.subr.mxu0 0.0
    %448 = vmatpush1.msra.mxu0 0.0
    %449 = vmatprep.subr.mxu0 0.0
    %450 = vmatpush1.msra.mxu0 0.0
    %451 = vmatprep.subr.mxu0 0.0
    %452 = vmatpush1.msra.mxu0 0.0
    %453 = vmatprep.mubr.f32.mxu0 0.0
    %454 = vmatmul.mubr.f32.gmra.mrb[0].mxu0 %v387
    %v455 = vpop.f32.mrb[0].mxu0
    %v456 = vadd.f32 0.0, %v455
    %v457 = vpop.f32.mrb[0].mxu0
    %458 = vdwg.mxu0
    %v460 = vrot.slane %v456, 5
    %v461 = vrot.slane %v456, 6
    %v464 = vadd.f32 %v117, %v460
    %v465 = vadd.f32 %v122, %v461
    %v466 = vtanh.pop %v464
    %v467 = vtanh.pop %v465
    %v470 = vrot.slane %v466, 3
    %v471 = vrot.slane %v467, 2
    %v472 = vsel %vm215, %v471, %v470
    %v473 = vsel %vm130, %v472, 0
    %475 = vmatprep.subr.mxu0 0.0
    %476 = vmatpush1.msra.mxu0 %v125
    %477 = vmatprep.subr.mxu0 0.0
    %478 = vmatpush1.msra.mxu0 %v126
    %479 = vmatprep.subr.mxu0 0.0
    %480 = vmatpush1.msra.mxu0 %v127
    %481 = vmatprep.subr.mxu0 0.0
    %482 = vmatpush1.msra.mxu0 %v128
    %483 = vmatprep.subr.mxu0 0.0
    %484 = vmatpush1.msra.mxu0 0.0
    %485 = vmatprep.subr.mxu0 0.0
    %486 = vmatpush1.msra.mxu0 0.0
    %487 = vmatprep.subr.mxu0 0.0
    %488 = vmatpush1.msra.mxu0 0.0
    %489 = vmatprep.subr.mxu0 0.0
    %490 = vmatpush1.msra.mxu0 0.0
    %491 = vmatprep.subr.mxu0 0.0
    %492 = vmatpush1.msra.mxu0 0.0
    %493 = vmatprep.subr.mxu0 0.0
    %494 = vmatpush1.msra.mxu0 0.0
    %495 = vmatprep.subr.mxu0 0.0
    %496 = vmatpush1.msra.mxu0 0.0
    %497 = vmatprep.subr.mxu0 0.0
    %498 = vmatpush1.msra.mxu0 0.0
    %499 = vmatprep.subr.mxu0 0.0
    %500 = vmatpush1.msra.mxu0 0.0
    %501 = vmatprep.subr.mxu0 0.0
    %502 = vmatpush1.msra.mxu0 0.0
    %503 = vmatprep.subr.mxu0 0.0
    %504 = vmatpush1.msra.mxu0 0.0
    %505 = vmatprep.subr.mxu0 0.0
    %506 = vmatpush1.msra.mxu0 0.0
    %507 = vmatprep.subr.mxu0 0.0
    %508 = vmatpush1.msra.mxu0 0.0
    %509 = vmatprep.subr.mxu0 0.0
    %510 = vmatpush1.msra.mxu0 0.0
    %511 = vmatprep.subr.mxu0 0.0
    %512 = vmatpush1.msra.mxu0 0.0
    %513 = vmatprep.subr.mxu0 0.0
    %514 = vmatpush1.msra.mxu0 0.0
    %515 = vmatprep.subr.mxu0 0.0
    %516 = vmatpush1.msra.mxu0 0.0
    %517 = vmatprep.subr.mxu0 0.0
    %518 = vmatpush1.msra.mxu0 0.0
    %519 = vmatprep.subr.mxu0 0.0
    %520 = vmatpush1.msra.mxu0 0.0
    %521 = vmatprep.subr.mxu0 0.0
    %522 = vmatpush1.msra.mxu0 0.0
    %523 = vmatprep.subr.mxu0 0.0
    %524 = vmatpush1.msra.mxu0 0.0
    %525 = vmatprep.subr.mxu0 0.0
    %526 = vmatpush1.msra.mxu0 0.0
    %527 = vmatprep.subr.mxu0 0.0
    %528 = vmatpush1.msra.mxu0 0.0
    %529 = vmatprep.subr.mxu0 0.0
    %530 = vmatpush1.msra.mxu0 0.0
    %531 = vmatprep.subr.mxu0 0.0
    %532 = vmatpush1.msra.mxu0 0.0
    %533 = vmatprep.subr.mxu0 0.0
    %534 = vmatpush1.msra.mxu0 0.0
    %535 = vmatprep.subr.mxu0 0.0
    %536 = vmatpush1.msra.mxu0 0.0
    %537 = vmatprep.subr.mxu0 0.0
    %538 = vmatpush1.msra.mxu0 0.0
    %539 = vmatprep.mubr.f32.mxu0 0.0
    %540 = vmatmul.mubr.f32.gmra.mrb[0].mxu0 %v473
    %v541 = vpop.f32.mrb[0].mxu0
    %v542 = vadd.f32 0.0, %v541
    %v543 = vpop.f32.mrb[0].mxu0
    %544 = vdwg.mxu0
    %v546 = vrot.slane %v542, 4
    %v547 = vrot.slane %v542, 5
    %v550 = vadd.f32 %v117, %v546
    %v551 = vadd.f32 %v122, %v547
    %v552 = vtanh.pop %v550
    %v553 = vtanh.pop %v551
    %v556 = vrot.slane %v552, 4
    %v557 = vrot.slane %v553, 3
    %v558 = vsel %vm215, %v557, %v556
    %v559 = vsel %vm130, %v558, 0
    %561 = vmatprep.subr.mxu0 0.0
    %562 = vmatpush1.msra.mxu0 %v125
    %563 = vmatprep.subr.mxu0 0.0
    %564 = vmatpush1.msra.mxu0 %v126
    %565 = vmatprep.subr.mxu0 0.0
    %566 = vmatpush1.msra.mxu0 %v127
    %567 = vmatprep.subr.mxu0 0.0
    %568 = vmatpush1.msra.mxu0 %v128
    %569 = vmatprep.subr.mxu0 0.0
    %570 = vmatpush1.msra.mxu0 0.0
    %571 = vmatprep.subr.mxu0 0.0
    %572 = vmatpush1.msra.mxu0 0.0
    %573 = vmatprep.subr.mxu0 0.0
    %574 = vmatpush1.msra.mxu0 0.0
    %575 = vmatprep.subr.mxu0 0.0
    %576 = vmatpush1.msra.mxu0 0.0
    %577 = vmatprep.subr.mxu0 0.0
    %578 = vmatpush1.msra.mxu0 0.0
    %579 = vmatprep.subr.mxu0 0.0
    %580 = vmatpush1.msra.mxu0 0.0
    %581 = vmatprep.subr.mxu0 0.0
    %582 = vmatpush1.msra.mxu0 0.0
    %583 = vmatprep.subr.mxu0 0.0
    %584 = vmatpush1.msra.mxu0 0.0
    %585 = vmatprep.subr.mxu0 0.0
    %586 = vmatpush1.msra.mxu0 0.0
    %587 = vmatprep.subr.mxu0 0.0
    %588 = vmatpush1.msra.mxu0 0.0
    %589 = vmatprep.subr.mxu0 0.0
    %590 = vmatpush1.msra.mxu0 0.0
    %591 = vmatprep.subr.mxu0 0.0
    %592 = vmatpush1.msra.mxu0 0.0
    %593 = vmatprep.subr.mxu0 0.0
    %594 = vmatpush1.msra.mxu0 0.0
    %595 = vmatprep.subr.mxu0 0.0
    %596 = vmatpush1.msra.mxu0 0.0
    %597 = vmatprep.subr.mxu0 0.0
    %598 = vmatpush1.msra.mxu0 0.0
    %599 = vmatprep.subr.mxu0 0.0
    %600 = vmatpush1.msra.mxu0 0.0
    %601 = vmatprep.subr.mxu0 0.0
    %602 = vmatpush1.msra.mxu0 0.0
    %603 = vmatprep.subr.mxu0 0.0
    %604 = vmatpush1.msra.mxu0 0.0
    %605 = vmatprep.subr.mxu0 0.0
    %606 = vmatpush1.msra.mxu0 0.0
    %607 = vmatprep.subr.mxu0 0.0
    %608 = vmatpush1.msra.mxu0 0.0
    %609 = vmatprep.subr.mxu0 0.0
    %610 = vmatpush1.msra.mxu0 0.0
    %611 = vmatprep.subr.mxu0 0.0
    %612 = vmatpush1.msra.mxu0 0.0
    %613 = vmatprep.subr.mxu0 0.0
    %614 = vmatpush1.msra.mxu0 0.0
    %615 = vmatprep.subr.mxu0 0.0
    %616 = vmatpush1.msra.mxu0 0.0
    %617 = vmatprep.subr.mxu0 0.0
    %618 = vmatpush1.msra.mxu0 0.0
    %619 = vmatprep.subr.mxu0 0.0
    %620 = vmatpush1.msra.mxu0 0.0
    %621 = vmatprep.subr.mxu0 0.0
    %622 = vmatpush1.msra.mxu0 0.0
    %623 = vmatprep.subr.mxu0 0.0
    %624 = vmatpush1.msra.mxu0 0.0
    %625 = vmatprep.mubr.f32.mxu0 0.0
    %626 = vmatmul.mubr.f32.gmra.mrb[0].mxu0 %v559
    %v627 = vpop.f32.mrb[0].mxu0
    %v628 = vadd.f32 0.0, %v627
    %v629 = vpop.f32.mrb[0].mxu0
    %630 = vdwg.mxu0
    %v632 = vrot.slane %v628, 3
    %v633 = vrot.slane %v628, 4
    %v636 = vadd.f32 %v117, %v632
    %v637 = vadd.f32 %v122, %v633
    %v638 = vtanh.pop %v636
    %v639 = vtanh.pop %v637
    %v642 = vrot.slane %v638, 5
    %v643 = vrot.slane %v639, 4
    %v644 = vsel %vm215, %v643, %v642
    %v645 = vsel %vm130, %v644, 0
    %647 = vmatprep.subr.mxu0 0.0
    %648 = vmatpush1.msra.mxu0 %v125
    %649 = vmatprep.subr.mxu0 0.0
    %650 = vmatpush1.msra.mxu0 %v126
    %651 = vmatprep.subr.mxu0 0.0
    %652 = vmatpush1.msra.mxu0 %v127
    %653 = vmatprep.subr.mxu0 0.0
    %654 = vmatpush1.msra.mxu0 %v128
    %655 = vmatprep.subr.mxu0 0.0
    %656 = vmatpush1.msra.mxu0 0.0
    %657 = vmatprep.subr.mxu0 0.0
    %658 = vmatpush1.msra.mxu0 0.0
    %659 = vmatprep.subr.mxu0 0.0
    %660 = vmatpush1.msra.mxu0 0.0
    %661 = vmatprep.subr.mxu0 0.0
    %662 = vmatpush1.msra.mxu0 0.0
    %663 = vmatprep.subr.mxu0 0.0
    %664 = vmatpush1.msra.mxu0 0.0
    %665 = vmatprep.subr.mxu0 0.0
    %666 = vmatpush1.msra.mxu0 0.0
    %667 = vmatprep.subr.mxu0 0.0
    %668 = vmatpush1.msra.mxu0 0.0
    %669 = vmatprep.subr.mxu0 0.0
    %670 = vmatpush1.msra.mxu0 0.0
    %671 = vmatprep.subr.mxu0 0.0
    %672 = vmatpush1.msra.mxu0 0.0
    %673 = vmatprep.subr.mxu0 0.0
    %674 = vmatpush1.msra.mxu0 0.0
    %675 = vmatprep.subr.mxu0 0.0
    %676 = vmatpush1.msra.mxu0 0.0
    %677 = vmatprep.subr.mxu0 0.0
    %678 = vmatpush1.msra.mxu0 0.0
    %679 = vmatprep.subr.mxu0 0.0
    %680 = vmatpush1.msra.mxu0 0.0
    %681 = vmatprep.subr.mxu0 0.0
    %682 = vmatpush1.msra.mxu0 0.0
    %683 = vmatprep.subr.mxu0 0.0
    %684 = vmatpush1.msra.mxu0 0.0
    %685 = vmatprep.subr.mxu0 0.0
    %686 = vmatpush1.msra.mxu0 0.0
    %687 = vmatprep.subr.mxu0 0.0
    %688 = vmatpush1.msra.mxu0 0.0
    %689 = vmatprep.subr.mxu0 0.0
    %690 = vmatpush1.msra.mxu0 0.0
    %691 = vmatprep.subr.mxu0 0.0
    %692 = vmatpush1.msra.mxu0 0.0
    %693 = vmatprep.subr.mxu0 0.0
    %694 = vmatpush1.msra.mxu0 0.0
    %695 = vmatprep.subr.mxu0 0.0
    %696 = vmatpush1.msra.mxu0 0.0
    %697 = vmatprep.subr.mxu0 0.0
    %698 = vmatpush1.msra.mxu0 0.0
    %699 = vmatprep.subr.mxu0 0.0
    %700 = vmatpush1.msra.mxu0 0.0
    %701 = vmatprep.subr.mxu0 0.0
    %702 = vmatpush1.msra.mxu0 0.0
    %703 = vmatprep.subr.mxu0 0.0
    %704 = vmatpush1.msra.mxu0 0.0
    %705 = vmatprep.subr.mxu0 0.0
    %706 = vmatpush1.msra.mxu0 0.0
    %707 = vmatprep.subr.mxu0 0.0
    %708 = vmatpush1.msra.mxu0 0.0
    %709 = vmatprep.subr.mxu0 0.0
    %710 = vmatpush1.msra.mxu0 0.0
    %711 = vmatprep.mubr.f32.mxu0 0.0
    %712 = vmatmul.mubr.f32.gmra.mrb[0].mxu0 %v645
    %v713 = vpop.f32.mrb[0].mxu0
    %v714 = vadd.f32 0.0, %v713
    %v715 = vpop.f32.mrb[0].mxu0
    %716 = vdwg.mxu0
    %v718 = vrot.slane %v714, 2
    %v719 = vrot.slane %v714, 3
    %v722 = vadd.f32 %v117, %v718
    %v723 = vadd.f32 %v122, %v719
    %v724 = vtanh.pop %v722
    %v725 = vtanh.pop %v723
    %v728 = vrot.slane %v724, 6
    %v729 = vrot.slane %v725, 5
    %v730 = vsel %vm215, %v729, %v728
    %v731 = vsel %vm130, %v730, 0
    %733 = vmatprep.subr.mxu0 0.0
    %734 = vmatpush1.msra.mxu0 %v125
    %735 = vmatprep.subr.mxu0 0.0
    %736 = vmatpush1.msra.mxu0 %v126
    %737 = vmatprep.subr.mxu0 0.0
    %738 = vmatpush1.msra.mxu0 %v127
    %739 = vmatprep.subr.mxu0 0.0
    %740 = vmatpush1.msra.mxu0 %v128
    %741 = vmatprep.subr.mxu0 0.0
    %742 = vmatpush1.msra.mxu0 0.0
    %743 = vmatprep.subr.mxu0 0.0
    %744 = vmatpush1.msra.mxu0 0.0
    %745 = vmatprep.subr.mxu0 0.0
    %746 = vmatpush1.msra.mxu0 0.0
    %747 = vmatprep.subr.mxu0 0.0
    %748 = vmatpush1.msra.mxu0 0.0
    %749 = vmatprep.subr.mxu0 0.0
    %750 = vmatpush1.msra.mxu0 0.0
    %751 = vmatprep.subr.mxu0 0.0
    %752 = vmatpush1.msra.mxu0 0.0
    %753 = vmatprep.subr.mxu0 0.0
    %754 = vmatpush1.msra.mxu0 0.0
    %755 = vmatprep.subr.mxu0 0.0
    %756 = vmatpush1.msra.mxu0 0.0
    %757 = vmatprep.subr.mxu0 0.0
    %758 = vmatpush1.msra.mxu0 0.0
    %759 = vmatprep.subr.mxu0 0.0
    %760 = vmatpush1.msra.mxu0 0.0
    %761 = vmatprep.subr.mxu0 0.0
    %762 = vmatpush1.msra.mxu0 0.0
    %763 = vmatprep.subr.mxu0 0.0
    %764 = vmatpush1.msra.mxu0 0.0
    %765 = vmatprep.subr.mxu0 0.0
    %766 = vmatpush1.msra.mxu0 0.0
    %767 = vmatprep.subr.mxu0 0.0
    %768 = vmatpush1.msra.mxu0 0.0
    %769 = vmatprep.subr.mxu0 0.0
    %770 = vmatpush1.msra.mxu0 0.0
    %771 = vmatprep.subr.mxu0 0.0
    %772 = vmatpush1.msra.mxu0 0.0
    %773 = vmatprep.subr.mxu0 0.0
    %774 = vmatpush1.msra.mxu0 0.0
    %775 = vmatprep.subr.mxu0 0.0
    %776 = vmatpush1.msra.mxu0 0.0
    %777 = vmatprep.subr.mxu0 0.0
    %778 = vmatpush1.msra.mxu0 0.0
    %779 = vmatprep.subr.mxu0 0.0
    %780 = vmatpush1.msra.mxu0 0.0
    %781 = vmatprep.subr.mxu0 0.0
    %782 = vmatpush1.msra.mxu0 0.0
    %783 = vmatprep.subr.mxu0 0.0
    %784 = vmatpush1.msra.mxu0 0.0
    %785 = vmatprep.subr.mxu0 0.0
    %786 = vmatpush1.msra.mxu0 0.0
    %787 = vmatprep.subr.mxu0 0.0
    %788 = vmatpush1.msra.mxu0 0.0
    %789 = vmatprep.subr.mxu0 0.0
    %790 = vmatpush1.msra.mxu0 0.0
    %791 = vmatprep.subr.mxu0 0.0
    %792 = vmatpush1.msra.mxu0 0.0
    %793 = vmatprep.subr.mxu0 0.0
    %794 = vmatpush1.msra.mxu0 0.0
    %795 = vmatprep.subr.mxu0 0.0
    %796 = vmatpush1.msra.mxu0 0.0
    %797 = vmatprep.mubr.f32.mxu0 0.0
    %798 = vmatmul.mubr.f32.gmra.mrb[0].mxu0 %v731
    %v799 = vpop.f32.mrb[0].mxu0
    %v800 = vadd.f32 0.0, %v799
    %v801 = vpop.f32.mrb[0].mxu0
    %802 = vdwg.mxu0
    %v804 = vrot.slane %v800, 1
    %v805 = vrot.slane %v800, 2
    %v808 = vadd.f32 %v117, %v804
    %v809 = vadd.f32 %v122, %v805
    %v810 = vtanh.pop %v808
    %v811 = vtanh.pop %v809
    %v814 = vrot.slane %v811, 7
    %vm817 = vcmask 261127
    %818 = vst.msk [vmem:[#allocation2 - $0x7] sm:$0x80] %vm817, %v810
    %vm819 = vcmask 253952
    %820 = vst.msk [vmem:[#allocation2 + $0x1] sm:$0x1] %vm819, %v814
    %vm821 = vcmask 1040384
    %v822 = vsel %vm821, %v210, %v295
    %v823 = vsel %vm821, %v211, %v296
    %vm824 = vcmask 1041408
    %v825 = vsel %vm824, %v822, %v380
    %v826 = vsel %vm824, %v823, %v381
    %vm827 = vcmask 1042432
    %v828 = vsel %vm827, %v825, %v466
    %v829 = vsel %vm827, %v826, %v467
    %v830 = vsel %vm46, %v828, %v552
    %v831 = vsel %vm46, %v829, %v553
    %vm832 = vcmask 1044480
    %v833 = vsel %vm832, %v830, %v638
    %v834 = vsel %vm832, %v831, %v639
    %vm835 = vcmask 1045504
    %v836 = vsel %vm835, %v833, %v724
    %v837 = vsel %vm835, %v834, %v725
    %vm838 = vcmask 1046528
    %v839 = vsel %vm838, %v836, %v810
    %v840 = vsel %vm838, %v837, %v811
    %v841 = vld [vmem:[%s5] sm:$0xff]
    %v842 = vld [vmem:[%s5 + $0x8] sm:$0xff]
    %v843 = vld [vmem:[%s5 + $0x10] sm:$0xff]
    %v844 = vld [vmem:[%s5 + $0x18] sm:$0xff]
    %v845 = vld [vmem:[%s6] sm:$0x1]
    %v847 = vlaneseq
    %v848 = vshrl.u32 %v847, 7
    %v849 = vsub.s32 0, %v848
    %v850 = vrot.slane %v845, %v849
    %v853 = vsel %vm130, %v839, 0
    %v856 = vsel %vm130, %v840, 0
    %858 = vmatprep.subr.mxu0 0.0
    %859 = vmatpush1.msra.mxu0 %v841
    %860 = vmatprep.subr.mxu0 0.0
    %861 = vmatpush1.msra.mxu0 %v842
    %862 = vmatprep.subr.mxu0 0.0
    %863 = vmatpush1.msra.mxu0 %v843
    %864 = vmatprep.subr.mxu0 0.0
    %865 = vmatpush1.msra.mxu0 %v844
    %866 = vmatprep.subr.mxu0 0.0
    %867 = vmatpush1.msra.mxu0 0.0
    %868 = vmatprep.subr.mxu0 0.0
    %869 = vmatpush1.msra.mxu0 0.0
    %870 = vmatprep.subr.mxu0 0.0
    %871 = vmatpush1.msra.mxu0 0.0
    %872 = vmatprep.subr.mxu0 0.0
    %873 = vmatpush1.msra.mxu0 0.0
    %874 = vmatprep.subr.mxu0 0.0
    %875 = vmatpush1.msra.mxu0 0.0
    %876 = vmatprep.subr.mxu0 0.0
    %877 = vmatpush1.msra.mxu0 0.0
    %878 = vmatprep.subr.mxu0 0.0
    %879 = vmatpush1.msra.mxu0 0.0
    %880 = vmatprep.subr.mxu0 0.0
    %881 = vmatpush1.msra.mxu0 0.0
    %882 = vmatprep.subr.mxu0 0.0
    %883 = vmatpush1.msra.mxu0 0.0
    %884 = vmatprep.subr.mxu0 0.0
    %885 = vmatpush1.msra.mxu0 0.0
    %886 = vmatprep.subr.mxu0 0.0
    %887 = vmatpush1.msra.mxu0 0.0
    %888 = vmatprep.subr.mxu0 0.0
    %889 = vmatpush1.msra.mxu0 0.0
    %890 = vmatprep.subr.mxu0 0.0
    %891 = vmatpush1.msra.mxu0 0.0
    %892 = vmatprep.subr.mxu0 0.0
    %893 = vmatpush1.msra.mxu0 0.0
    %894 = vmatprep.subr.mxu0 0.0
    %895 = vmatpush1.msra.mxu0 0.0
    %896 = vmatprep.subr.mxu0 0.0
    %897 = vmatpush1.msra.mxu0 0.0
    %898 = vmatprep.subr.mxu0 0.0
    %899 = vmatpush1.msra.mxu0 0.0
    %900 = vmatprep.subr.mxu0 0.0
    %901 = vmatpush1.msra.mxu0 0.0
    %902 = vmatprep.subr.mxu0 0.0
    %903 = vmatpush1.msra.mxu0 0.0
    %904 = vmatprep.subr.mxu0 0.0
    %905 = vmatpush1.msra.mxu0 0.0
    %906 = vmatprep.subr.mxu0 0.0
    %907 = vmatpush1.msra.mxu0 0.0
    %908 = vmatprep.subr.mxu0 0.0
    %909 = vmatpush1.msra.mxu0 0.0
    %910 = vmatprep.subr.mxu0 0.0
    %911 = vmatpush1.msra.mxu0 0.0
    %912 = vmatprep.subr.mxu0 0.0
    %913 = vmatpush1.msra.mxu0 0.0
    %914 = vmatprep.subr.mxu0 0.0
    %915 = vmatpush1.msra.mxu0 0.0
    %916 = vmatprep.subr.mxu0 0.0
    %917 = vmatpush1.msra.mxu0 0.0
    %918 = vmatprep.subr.mxu0 0.0
    %919 = vmatpush1.msra.mxu0 0.0
    %920 = vmatprep.subr.mxu0 0.0
    %921 = vmatpush1.msra.mxu0 0.0
    %922 = vmatprep.mubr.f32.mxu0 0.0
    %923 = vmatmul.mubr.f32.gmra.mrb[0].mxu0 %v853
    %v924 = vpop.f32.mrb[0].mxu0
    %v925 = vadd.f32 %v850, %v924
    %v926 = vpop.f32.mrb[0].mxu0
    %927 = vmatprep.mubr.f32.mxu0 0.0
    %928 = vmatmul.mubr.f32.gmra.mrb[0].mxu0 %v856
    %v929 = vpop.f32.mrb[0].mxu0
    %v930 = vadd.f32 %v850, %v929
    %v931 = vpop.f32.mrb[0].mxu0
    %932 = vdwg.mxu0
    %vm933 = vcmask 23552
    %v934 = vsel %vm933, %v925, -inf
    %935 = vmax.xlane.f32.xlu0 %v934
    %v936 = vpop.xlane.xlu0 %935
    %v937 = vsel %vm933, %v930, -inf
    %938 = vmax.xlane.f32.xlu0 %v937
    %v939 = vpop.xlane.xlu0 %938
    %v940 = vsub.f32 %v925, %v936
    %v941 = vsub.f32 %v930, %v939
    %v942 = vmul.f32 %v940, 1.442695
    %v943 = vpow.pop %v942
    %v944 = vmul.f32 %v941, 1.442695
    %v945 = vpow.pop %v944
    %v946 = vsel %vm933, %v943, 0.0
    %947 = vadd.xlane.f32.xlu0 %v946
    %v948 = vpop.xlane.xlu0 %947
    %v949 = vsel %vm933, %v945, 0.0
    %950 = vadd.xlane.f32.xlu0 %v949
    %v951 = vpop.xlane.xlu0 %950
    %v952 = vrcp.pop %v948
    %v953 = vrcp.pop %v951
    %v954 = vmul.f32 %v943, %v952
    %v955 = vmul.f32 %v945, %v953
    %956 = vst.msk [vmem:[%s7] sm:$0xff] %vm933, %v954
    %957 = vst.msk [vmem:[%s7 + $0x8] sm:$0xff] %vm933, %v955
    // Predicated region
    $region30: #{rnn_model_forward.1} parent=1 // pred_check
      _
    $region31: #{rnn_model_forward.1} parent=1 // pred_check_branch
      %959 = sbr.rel (0) target = $region33
    $region32: #{rnn_model_forward.1} parent=1 // pred_region
      _
    $region33: #{rnn_model_forward.1} parent=1 // pred_fallthru
      _
    // Predicated region
    $region34: #{rnn_model_forward.1} parent=1 // pred_check
      _
    $region35: #{rnn_model_forward.1} parent=1 // pred_check_branch
      %961 = sbr.rel (0) target = $region37
    $region36: #{rnn_model_forward.1} parent=1 // pred_region
      %s963 = ssub.s32 32, 32
      %964 = vsyncadd [#allocation3], %s963
      %s966 = sshll.u32 [#allocation2], 4
      %s967 = int_to_ptr.vmem [resolvable:$true] %s966
      %969 = dma.vmem_to_hbm [thread:$0]  %s967, 32, %s8, [#allocation3]
    $region37: #{rnn_model_forward.1} parent=1 // pred_fallthru
      _
    // Predicated region
    $region38: #{rnn_model_forward.1} parent=1 // pred_check
      _
    $region39: #{rnn_model_forward.1} parent=1 // pred_check_branch
      %971 = sbr.rel (0) target = $region41
    $region40: #{rnn_model_forward.1} parent=1 // pred_region
      _
    $region41: #{rnn_model_forward.1} parent=1 // pred_fallthru
      _
    // Predicated region
    $region42: #{rnn_model_forward.1} parent=1 // pred_check
      _
    $region43: #{rnn_model_forward.1} parent=1 // pred_check_branch
      %973 = sbr.rel (0) target = $region45
    $region44: #{rnn_model_forward.1} parent=1 // pred_region
      %974 = dma.done [#allocation3], 32
    $region45: #{rnn_model_forward.1} parent=1 // pred_fallthru
      _
    %975 = vsyncpa [#allocation3], 1

</llo_original>
